<compile_context>
chip_gen: v7x
topology: tpu7x:2x2x1
jax: 0.10.0
libtpu: 0.0.40
codegen_flags: <defaults>
</compile_context>

<pallas_src>
import functools

import jax
import jax.numpy as jnp
from jax.experimental import pallas as pl
from jax.experimental.pallas import tpu as pltpu


def _tgrad(f, axis, is_first, is_last, inv):
    """torch.gradient(f, dim=axis)[0] with unit spacing.

    Central difference in the interior, one-sided at the two boundaries.
    Shifts are XLU rotations (pltpu.roll) with the two wrapped boundary
    rows/cols fixed up via select; `inv` holds the precomputed 0.5 / 1.0
    weights. f is a 2D (H, W) float32 array living in vregs.
    """
    n = f.shape[axis]
    fp = pltpu.roll(f, n - 1, axis=axis)   # fp[i] = f[(i + 1) % n]
    fm = pltpu.roll(f, 1, axis=axis)       # fm[i] = f[(i - 1) % n]
    fp = jnp.where(is_last, f, fp)         # one-sided diff at i == n - 1
    fm = jnp.where(is_first, f, fm)        # one-sided diff at i == 0
    return (fp - fm) * inv


def _laplacian(f, row_masks, col_masks):
    """gradient applied twice along each axis, exactly as the reference does."""
    rf, rl, rinv = row_masks
    cf, cl, cinv = col_masks
    g_r = _tgrad(f, 0, rf, rl, rinv)
    g_c = _tgrad(f, 1, cf, cl, cinv)
    return _tgrad(g_r, 0, rf, rl, rinv) + _tgrad(g_c, 1, cf, cl, cinv)


def _gl2_kernel(u_ref, psi_ref, out_ref, *, epsilon, tb, h, w):
    inv_eps2 = jnp.float32(1.0 / (epsilon * epsilon))
    inv_hw = jnp.float32(1.0 / (h * w))
    one = jnp.float32(1.0)
    half = jnp.float32(0.5)

    # Hoisted boundary masks / weights (built once per grid step, reused by
    # every _tgrad call for every sample in the block).
    row_idx = jax.lax.broadcasted_iota(jnp.int32, (h, w), 0)
    col_idx = jax.lax.broadcasted_iota(jnp.int32, (h, w), 1)
    row_first = row_idx == 0
    row_last = row_idx == h - 1
    col_first = col_idx == 0
    col_last = col_idx == w - 1
    inv_rows = jnp.where(row_first | row_last, one, half)
    inv_cols = jnp.where(col_first | col_last, one, half)
    row_masks = (row_first, row_last, inv_rows)
    col_masks = (col_first, col_last, inv_cols)

    block_sum = jnp.float32(0.0)
    for s in range(tb):  # tb is small & static -> fully unrolled
        u_x = u_ref[s, 0, :, :].astype(jnp.float32)
        u_y = u_ref[s, 1, :, :].astype(jnp.float32)
        psi_r = psi_ref[s, 0, :, :].astype(jnp.float32)
        psi_i = psi_ref[s, 1, :, :].astype(jnp.float32)

        lap_u = (_laplacian(u_x, row_masks, col_masks)
                 + _laplacian(u_y, row_masks, col_masks))

        # No sqrt: (1 - |psi|)^... uses |psi|^2 directly (sqrt-then-square
        # in the reference is algebraically redundant).
        mag_sq = psi_r * psi_r + psi_i * psi_i
        coef = inv_eps2 * (one - mag_sq)

        gl_real = lap_u + coef * psi_r
        gl_imag = coef * psi_i

        block_sum = block_sum + jnp.sum(gl_real * gl_real
                                        + gl_imag * gl_imag) * inv_hw

    # Lane-dense per-block partial sum; reduced + divided by B in plain JAX.
    out_ref[...] = jnp.broadcast_to(block_sum, out_ref.shape).astype(jnp.float32)


def _pick_tb(b, h, w):
    """Samples per grid step: fold small images, stay well inside VMEM."""
    per_sample_bytes = 2 * 2 * 2 * h * w * 4   # 2 inputs x 2 bufs x (2,H,W) f32
    budget = 8 * 1024 * 1024
    tb = max(1, min(b, 8, budget // max(per_sample_bytes, 1)))
    while b % tb:
        tb -= 1
    return tb


def gl2_loss(u, psi, epsilon=1.0):
    """Pallas implementation of GL2Loss.forward."""
    assert u.shape == psi.shape
    B, C, H, W = u.shape
    assert C == 2, "expected 2 channels (x/y resp. real/imag)"

    tb = _pick_tb(B, H, W)
    n_blocks = B // tb

    kernel = functools.partial(_gl2_kernel, epsilon=float(epsilon),
                               tb=tb, h=H, w=W)

    # Rough per-step VMEM need: double-buffered inputs + ~14 f32 (H, W) temps.
    est_vmem = 2 * 2 * (tb * 2 * H * W * 4) + 14 * H * W * 4 + 2 * 8 * 128 * 4
    cp_kwargs = dict(dimension_semantics=("parallel",))
    if est_vmem > 24 * 1024 * 1024:
        # Large samples: raise the scoped VMEM limit (v6e/v5e have headroom).
        # TODO(synk): switch to H-tiling with a 2-row halo for v7x (64 MiB VMEM).
        cp_kwargs["vmem_limit_bytes"] = min(int(est_vmem * 5 // 4),
                                            100 * 1024 * 1024)

    out = pl.pallas_call(
        kernel,
        out_shape=jax.ShapeDtypeStruct((n_blocks, 8, 128), jnp.float32),
        grid_spec=pltpu.PrefetchScalarGridSpec(
            num_scalar_prefetch=0,
            grid=(n_blocks,),
            in_specs=[
                pl.BlockSpec((tb, 2, H, W), lambda i: (i, 0, 0, 0)),
                pl.BlockSpec((tb, 2, H, W), lambda i: (i, 0, 0, 0)),
            ],
            out_specs=pl.BlockSpec((1, 8, 128), lambda i: (i, 0, 0)),
        ),
        compiler_params=pltpu.CompilerParams(**cp_kwargs),
        cost_estimate=pl.CostEstimate(
            flops=int(60 * B * H * W),
            transcendentals=0,
            bytes_accessed=int(2 * B * 2 * H * W * 4 + n_blocks * 8 * 128 * 4)),
    )(u, psi)

    return jnp.sum(out[:, 0, 0]) / jnp.float32(B)


def _gl2_loss_ref(u, psi, epsilon=1.0):
    """Pure-JAX reference (mirrors the PyTorch module) for verification."""
    B = u.shape[0]
    total = 0.0
    for i in range(B):
        u_x, u_y = u[i, 0], u[i, 1]
        psi_r, psi_i = psi[i, 0], psi[i, 1]
        gxx = jnp.gradient(u_x, axis=0)
        gxy = jnp.gradient(u_x, axis=1)
        gyx = jnp.gradient(u_y, axis=0)
        gyy = jnp.gradient(u_y, axis=1)
        lap_x = jnp.gradient(gxx, axis=0) + jnp.gradient(gxy, axis=1)
        lap_y = jnp.gradient(gyx, axis=0) + jnp.gradient(gyy, axis=1)
        lap = lap_x + lap_y
        mag = jnp.sqrt(psi_r ** 2 + psi_i ** 2)
        coef = (1.0 / epsilon ** 2) * (1.0 - mag ** 2)
        real = lap + coef * psi_r
        imag = coef * psi_i
        total = total + jnp.mean(real ** 2 + imag ** 2)
    return total / B


if __name__ == "__main__":
    key = jax.random.PRNGKey(0)
    ku, kpsi = jax.random.split(key)
    B, C, H, W = 2, 2, 16, 16
    u = jax.random.normal(ku, (B, C, H, W), dtype=jnp.float32)
    psi = jax.random.normal(kpsi, (B, C, H, W), dtype=jnp.float32)

    loss = jax.block_until_ready(gl2_loss(u, psi, epsilon=1.0))
    ref = jax.block_until_ready(_gl2_loss_ref(u, psi, epsilon=1.0))

    assert jnp.allclose(loss, ref, rtol=1e-5, atol=1e-5), (loss, ref)
    print("KERNEL_OK")
</pallas_src>

<mosaic_0001>
module attributes {stable_mosaic.version = 11 : i64} {
  func.func @_gl2_kernel(%arg0: i32, %arg1: memref<2x2x16x16xf32, #tpu.memory_space<vmem>>, %arg2: memref<2x2x16x16xf32, #tpu.memory_space<vmem>>, %arg3: memref<1x8x128xf32, #tpu.memory_space<vmem>>) attributes {dimension_semantics = [#tpu.dimension_semantics<parallel>], iteration_bounds = array<i64: 1>, scalar_prefetch = 0 : i64, scratch_operands = 0 : i64, tpu.core_type = #tpu.core_type<tc>, window_params = [{transform_indices = @transform_0, window_bounds = array<i64: 2, 2, 16, 16>}, {transform_indices = @transform_1, window_bounds = array<i64: 2, 2, 16, 16>}, {transform_indices = @transform_2, window_bounds = array<i64: 1, 8, 128>}]} {
    %0 = tpu.iota {dimensions = array<i32: 0>} : vector<16x16xi32>
    %1 = tpu.iota {dimensions = array<i32: 1>} : vector<16x16xi32>
    %c0_i32 = arith.constant 0 : i32
    %2 = vector.broadcast %c0_i32 : i32 to vector<16x16xi32>
    %3 = arith.cmpi eq, %0, %2 : vector<16x16xi32>
    %c15_i32 = arith.constant 15 : i32
    %4 = vector.broadcast %c15_i32 : i32 to vector<16x16xi32>
    %5 = arith.cmpi eq, %0, %4 : vector<16x16xi32>
    %c0_i32_0 = arith.constant 0 : i32
    %6 = vector.broadcast %c0_i32_0 : i32 to vector<16x16xi32>
    %7 = arith.cmpi eq, %1, %6 : vector<16x16xi32>
    %c15_i32_1 = arith.constant 15 : i32
    %8 = vector.broadcast %c15_i32_1 : i32 to vector<16x16xi32>
    %9 = arith.cmpi eq, %1, %8 : vector<16x16xi32>
    %10 = arith.ori %3, %5 : vector<16x16xi1>
    %cst = arith.constant 1.000000e+00 : f32
    %cst_2 = arith.constant 5.000000e-01 : f32
    %11 = vector.broadcast %cst : f32 to vector<16x16xf32>
    %12 = vector.broadcast %cst_2 : f32 to vector<16x16xf32>
    %13 = arith.select %10, %11, %12 : vector<16x16xi1>, vector<16x16xf32>
    %14 = arith.ori %7, %9 : vector<16x16xi1>
    %cst_3 = arith.constant 1.000000e+00 : f32
    %cst_4 = arith.constant 5.000000e-01 : f32
    %15 = vector.broadcast %cst_3 : f32 to vector<16x16xf32>
    %16 = vector.broadcast %cst_4 : f32 to vector<16x16xf32>
    %17 = arith.select %14, %15, %16 : vector<16x16xi1>, vector<16x16xf32>
    %c0 = arith.constant 0 : index
    %c0_5 = arith.constant 0 : index
    %c0_6 = arith.constant 0 : index
    %c0_7 = arith.constant 0 : index
    %18 = vector.load %arg1[%c0, %c0_5, %c0_6, %c0_7] : memref<2x2x16x16xf32, #tpu.memory_space<vmem>>, vector<1x1x16x16xf32>
    %19 = vector.shape_cast %18 : vector<1x1x16x16xf32> to vector<16x16xf32>
    %c0_8 = arith.constant 0 : index
    %c1 = arith.constant 1 : index
    %c0_9 = arith.constant 0 : index
    %c0_10 = arith.constant 0 : index
    %20 = vector.load %arg1[%c0_8, %c1, %c0_9, %c0_10] : memref<2x2x16x16xf32, #tpu.memory_space<vmem>>, vector<1x1x16x16xf32>
    %21 = vector.shape_cast %20 : vector<1x1x16x16xf32> to vector<16x16xf32>
    %c0_11 = arith.constant 0 : index
    %c0_12 = arith.constant 0 : index
    %c0_13 = arith.constant 0 : index
    %c0_14 = arith.constant 0 : index
    %22 = vector.load %arg2[%c0_11, %c0_12, %c0_13, %c0_14] : memref<2x2x16x16xf32, #tpu.memory_space<vmem>>, vector<1x1x16x16xf32>
    %23 = vector.shape_cast %22 : vector<1x1x16x16xf32> to vector<16x16xf32>
    %c0_15 = arith.constant 0 : index
    %c1_16 = arith.constant 1 : index
    %c0_17 = arith.constant 0 : index
    %c0_18 = arith.constant 0 : index
    %24 = vector.load %arg2[%c0_15, %c1_16, %c0_17, %c0_18] : memref<2x2x16x16xf32, #tpu.memory_space<vmem>>, vector<1x1x16x16xf32>
    %25 = vector.shape_cast %24 : vector<1x1x16x16xf32> to vector<16x16xf32>
    %c15_i32_19 = arith.constant 15 : i32
    %26 = tpu.dynamic_rotate %19 by %c15_i32_19 dim 0 : vector<16x16xf32>, i32 -> vector<16x16xf32>
    %c1_i32 = arith.constant 1 : i32
    %27 = tpu.dynamic_rotate %19 by %c1_i32 dim 0 : vector<16x16xf32>, i32 -> vector<16x16xf32>
    %28 = arith.select %5, %19, %26 : vector<16x16xi1>, vector<16x16xf32>
    %29 = arith.select %3, %19, %27 : vector<16x16xi1>, vector<16x16xf32>
    %30 = arith.subf %28, %29 : vector<16x16xf32>
    %31 = arith.mulf %30, %13 : vector<16x16xf32>
    %c15_i32_20 = arith.constant 15 : i32
    %32 = tpu.dynamic_rotate %19 by %c15_i32_20 dim 1 : vector<16x16xf32>, i32 -> vector<16x16xf32>
    %c1_i32_21 = arith.constant 1 : i32
    %33 = tpu.dynamic_rotate %19 by %c1_i32_21 dim 1 : vector<16x16xf32>, i32 -> vector<16x16xf32>
    %34 = arith.select %9, %19, %32 : vector<16x16xi1>, vector<16x16xf32>
    %35 = arith.select %7, %19, %33 : vector<16x16xi1>, vector<16x16xf32>
    %36 = arith.subf %34, %35 : vector<16x16xf32>
    %37 = arith.mulf %36, %17 : vector<16x16xf32>
    %c15_i32_22 = arith.constant 15 : i32
    %38 = tpu.dynamic_rotate %31 by %c15_i32_22 dim 0 : vector<16x16xf32>, i32 -> vector<16x16xf32>
    %c1_i32_23 = arith.constant 1 : i32
    %39 = tpu.dynamic_rotate %31 by %c1_i32_23 dim 0 : vector<16x16xf32>, i32 -> vector<16x16xf32>
    %40 = arith.select %5, %31, %38 : vector<16x16xi1>, vector<16x16xf32>
    %41 = arith.select %3, %31, %39 : vector<16x16xi1>, vector<16x16xf32>
    %42 = arith.subf %40, %41 : vector<16x16xf32>
    %43 = arith.mulf %42, %13 : vector<16x16xf32>
    %c15_i32_24 = arith.constant 15 : i32
    %44 = tpu.dynamic_rotate %37 by %c15_i32_24 dim 1 : vector<16x16xf32>, i32 -> vector<16x16xf32>
    %c1_i32_25 = arith.constant 1 : i32
    %45 = tpu.dynamic_rotate %37 by %c1_i32_25 dim 1 : vector<16x16xf32>, i32 -> vector<16x16xf32>
    %46 = arith.select %9, %37, %44 : vector<16x16xi1>, vector<16x16xf32>
    %47 = arith.select %7, %37, %45 : vector<16x16xi1>, vector<16x16xf32>
    %48 = arith.subf %46, %47 : vector<16x16xf32>
    %49 = arith.mulf %48, %17 : vector<16x16xf32>
    %50 = arith.addf %43, %49 : vector<16x16xf32>
    %c15_i32_26 = arith.constant 15 : i32
    %51 = tpu.dynamic_rotate %21 by %c15_i32_26 dim 0 : vector<16x16xf32>, i32 -> vector<16x16xf32>
    %c1_i32_27 = arith.constant 1 : i32
    %52 = tpu.dynamic_rotate %21 by %c1_i32_27 dim 0 : vector<16x16xf32>, i32 -> vector<16x16xf32>
    %53 = arith.select %5, %21, %51 : vector<16x16xi1>, vector<16x16xf32>
    %54 = arith.select %3, %21, %52 : vector<16x16xi1>, vector<16x16xf32>
    %55 = arith.subf %53, %54 : vector<16x16xf32>
    %56 = arith.mulf %55, %13 : vector<16x16xf32>
    %c15_i32_28 = arith.constant 15 : i32
    %57 = tpu.dynamic_rotate %21 by %c15_i32_28 dim 1 : vector<16x16xf32>, i32 -> vector<16x16xf32>
    %c1_i32_29 = arith.constant 1 : i32
    %58 = tpu.dynamic_rotate %21 by %c1_i32_29 dim 1 : vector<16x16xf32>, i32 -> vector<16x16xf32>
    %59 = arith.select %9, %21, %57 : vector<16x16xi1>, vector<16x16xf32>
    %60 = arith.select %7, %21, %58 : vector<16x16xi1>, vector<16x16xf32>
    %61 = arith.subf %59, %60 : vector<16x16xf32>
    %62 = arith.mulf %61, %17 : vector<16x16xf32>
    %c15_i32_30 = arith.constant 15 : i32
    %63 = tpu.dynamic_rotate %56 by %c15_i32_30 dim 0 : vector<16x16xf32>, i32 -> vector<16x16xf32>
    %c1_i32_31 = arith.constant 1 : i32
    %64 = tpu.dynamic_rotate %56 by %c1_i32_31 dim 0 : vector<16x16xf32>, i32 -> vector<16x16xf32>
    %65 = arith.select %5, %56, %63 : vector<16x16xi1>, vector<16x16xf32>
    %66 = arith.select %3, %56, %64 : vector<16x16xi1>, vector<16x16xf32>
    %67 = arith.subf %65, %66 : vector<16x16xf32>
    %68 = arith.mulf %67, %13 : vector<16x16xf32>
    %c15_i32_32 = arith.constant 15 : i32
    %69 = tpu.dynamic_rotate %62 by %c15_i32_32 dim 1 : vector<16x16xf32>, i32 -> vector<16x16xf32>
    %c1_i32_33 = arith.constant 1 : i32
    %70 = tpu.dynamic_rotate %62 by %c1_i32_33 dim 1 : vector<16x16xf32>, i32 -> vector<16x16xf32>
    %71 = arith.select %9, %62, %69 : vector<16x16xi1>, vector<16x16xf32>
    %72 = arith.select %7, %62, %70 : vector<16x16xi1>, vector<16x16xf32>
    %73 = arith.subf %71, %72 : vector<16x16xf32>
    %74 = arith.mulf %73, %17 : vector<16x16xf32>
    %75 = arith.addf %68, %74 : vector<16x16xf32>
    %76 = arith.addf %50, %75 : vector<16x16xf32>
    %77 = arith.mulf %23, %23 : vector<16x16xf32>
    %78 = arith.mulf %25, %25 : vector<16x16xf32>
    %79 = arith.addf %77, %78 : vector<16x16xf32>
    %cst_34 = arith.constant 1.000000e+00 : f32
    %80 = vector.broadcast %cst_34 : f32 to vector<16x16xf32>
    %81 = arith.subf %80, %79 : vector<16x16xf32>
    %cst_35 = arith.constant 1.000000e+00 : f32
    %82 = vector.broadcast %cst_35 : f32 to vector<16x16xf32>
    %83 = arith.mulf %82, %81 : vector<16x16xf32>
    %84 = arith.mulf %83, %23 : vector<16x16xf32>
    %85 = arith.addf %76, %84 : vector<16x16xf32>
    %86 = arith.mulf %83, %25 : vector<16x16xf32>
    %87 = arith.mulf %85, %85 : vector<16x16xf32>
    %88 = arith.mulf %86, %86 : vector<16x16xf32>
    %89 = arith.addf %87, %88 : vector<16x16xf32>
    %90 = vector.shape_cast %89 : vector<16x16xf32> to vector<1x16x16xf32>
    %cst_36 = arith.constant dense<0.000000e+00> : vector<1xf32>
    %91 = vector.multi_reduction <add>, %90, %cst_36 [1, 2] : vector<1x16x16xf32> to vector<1xf32>
    %92 = vector.shape_cast %91 : vector<1xf32> to vector<1x1x1xf32>
    %93 = vector.extract %92[0, 0, 0] : f32 from vector<1x1x1xf32>
    %cst_37 = arith.constant 3.906250e-03 : f32
    %94 = arith.mulf %93, %cst_37 : f32
    %cst_38 = arith.constant 0.000000e+00 : f32
    %95 = arith.addf %cst_38, %94 : f32
    %c1_39 = arith.constant 1 : index
    %c0_40 = arith.constant 0 : index
    %c0_41 = arith.constant 0 : index
    %c0_42 = arith.constant 0 : index
    %96 = vector.load %arg1[%c1_39, %c0_40, %c0_41, %c0_42] : memref<2x2x16x16xf32, #tpu.memory_space<vmem>>, vector<1x1x16x16xf32>
    %97 = vector.shape_cast %96 : vector<1x1x16x16xf32> to vector<16x16xf32>
    %c1_43 = arith.constant 1 : index
    %c1_44 = arith.constant 1 : index
    %c0_45 = arith.constant 0 : index
    %c0_46 = arith.constant 0 : index
    %98 = vector.load %arg1[%c1_43, %c1_44, %c0_45, %c0_46] : memref<2x2x16x16xf32, #tpu.memory_space<vmem>>, vector<1x1x16x16xf32>
    %99 = vector.shape_cast %98 : vector<1x1x16x16xf32> to vector<16x16xf32>
    %c1_47 = arith.constant 1 : index
    %c0_48 = arith.constant 0 : index
    %c0_49 = arith.constant 0 : index
    %c0_50 = arith.constant 0 : index
    %100 = vector.load %arg2[%c1_47, %c0_48, %c0_49, %c0_50] : memref<2x2x16x16xf32, #tpu.memory_space<vmem>>, vector<1x1x16x16xf32>
    %101 = vector.shape_cast %100 : vector<1x1x16x16xf32> to vector<16x16xf32>
    %c1_51 = arith.constant 1 : index
    %c1_52 = arith.constant 1 : index
    %c0_53 = arith.constant 0 : index
    %c0_54 = arith.constant 0 : index
    %102 = vector.load %arg2[%c1_51, %c1_52, %c0_53, %c0_54] : memref<2x2x16x16xf32, #tpu.memory_space<vmem>>, vector<1x1x16x16xf32>
    %103 = vector.shape_cast %102 : vector<1x1x16x16xf32> to vector<16x16xf32>
    %c15_i32_55 = arith.constant 15 : i32
    %104 = tpu.dynamic_rotate %97 by %c15_i32_55 dim 0 : vector<16x16xf32>, i32 -> vector<16x16xf32>
    %c1_i32_56 = arith.constant 1 : i32
    %105 = tpu.dynamic_rotate %97 by %c1_i32_56 dim 0 : vector<16x16xf32>, i32 -> vector<16x16xf32>
    %106 = arith.select %5, %97, %104 : vector<16x16xi1>, vector<16x16xf32>
    %107 = arith.select %3, %97, %105 : vector<16x16xi1>, vector<16x16xf32>
    %108 = arith.subf %106, %107 : vector<16x16xf32>
    %109 = arith.mulf %108, %13 : vector<16x16xf32>
    %c15_i32_57 = arith.constant 15 : i32
    %110 = tpu.dynamic_rotate %97 by %c15_i32_57 dim 1 : vector<16x16xf32>, i32 -> vector<16x16xf32>
    %c1_i32_58 = arith.constant 1 : i32
    %111 = tpu.dynamic_rotate %97 by %c1_i32_58 dim 1 : vector<16x16xf32>, i32 -> vector<16x16xf32>
    %112 = arith.select %9, %97, %110 : vector<16x16xi1>, vector<16x16xf32>
    %113 = arith.select %7, %97, %111 : vector<16x16xi1>, vector<16x16xf32>
    %114 = arith.subf %112, %113 : vector<16x16xf32>
    %115 = arith.mulf %114, %17 : vector<16x16xf32>
    %c15_i32_59 = arith.constant 15 : i32
    %116 = tpu.dynamic_rotate %109 by %c15_i32_59 dim 0 : vector<16x16xf32>, i32 -> vector<16x16xf32>
    %c1_i32_60 = arith.constant 1 : i32
    %117 = tpu.dynamic_rotate %109 by %c1_i32_60 dim 0 : vector<16x16xf32>, i32 -> vector<16x16xf32>
    %118 = arith.select %5, %109, %116 : vector<16x16xi1>, vector<16x16xf32>
    %119 = arith.select %3, %109, %117 : vector<16x16xi1>, vector<16x16xf32>
    %120 = arith.subf %118, %119 : vector<16x16xf32>
    %121 = arith.mulf %120, %13 : vector<16x16xf32>
    %c15_i32_61 = arith.constant 15 : i32
    %122 = tpu.dynamic_rotate %115 by %c15_i32_61 dim 1 : vector<16x16xf32>, i32 -> vector<16x16xf32>
    %c1_i32_62 = arith.constant 1 : i32
    %123 = tpu.dynamic_rotate %115 by %c1_i32_62 dim 1 : vector<16x16xf32>, i32 -> vector<16x16xf32>
    %124 = arith.select %9, %115, %122 : vector<16x16xi1>, vector<16x16xf32>
    %125 = arith.select %7, %115, %123 : vector<16x16xi1>, vector<16x16xf32>
    %126 = arith.subf %124, %125 : vector<16x16xf32>
    %127 = arith.mulf %126, %17 : vector<16x16xf32>
    %128 = arith.addf %121, %127 : vector<16x16xf32>
    %c15_i32_63 = arith.constant 15 : i32
    %129 = tpu.dynamic_rotate %99 by %c15_i32_63 dim 0 : vector<16x16xf32>, i32 -> vector<16x16xf32>
    %c1_i32_64 = arith.constant 1 : i32
    %130 = tpu.dynamic_rotate %99 by %c1_i32_64 dim 0 : vector<16x16xf32>, i32 -> vector<16x16xf32>
    %131 = arith.select %5, %99, %129 : vector<16x16xi1>, vector<16x16xf32>
    %132 = arith.select %3, %99, %130 : vector<16x16xi1>, vector<16x16xf32>
    %133 = arith.subf %131, %132 : vector<16x16xf32>
    %134 = arith.mulf %133, %13 : vector<16x16xf32>
    %c15_i32_65 = arith.constant 15 : i32
    %135 = tpu.dynamic_rotate %99 by %c15_i32_65 dim 1 : vector<16x16xf32>, i32 -> vector<16x16xf32>
    %c1_i32_66 = arith.constant 1 : i32
    %136 = tpu.dynamic_rotate %99 by %c1_i32_66 dim 1 : vector<16x16xf32>, i32 -> vector<16x16xf32>
    %137 = arith.select %9, %99, %135 : vector<16x16xi1>, vector<16x16xf32>
    %138 = arith.select %7, %99, %136 : vector<16x16xi1>, vector<16x16xf32>
    %139 = arith.subf %137, %138 : vector<16x16xf32>
    %140 = arith.mulf %139, %17 : vector<16x16xf32>
    %c15_i32_67 = arith.constant 15 : i32
    %141 = tpu.dynamic_rotate %134 by %c15_i32_67 dim 0 : vector<16x16xf32>, i32 -> vector<16x16xf32>
    %c1_i32_68 = arith.constant 1 : i32
    %142 = tpu.dynamic_rotate %134 by %c1_i32_68 dim 0 : vector<16x16xf32>, i32 -> vector<16x16xf32>
    %143 = arith.select %5, %134, %141 : vector<16x16xi1>, vector<16x16xf32>
    %144 = arith.select %3, %134, %142 : vector<16x16xi1>, vector<16x16xf32>
    %145 = arith.subf %143, %144 : vector<16x16xf32>
    %146 = arith.mulf %145, %13 : vector<16x16xf32>
    %c15_i32_69 = arith.constant 15 : i32
    %147 = tpu.dynamic_rotate %140 by %c15_i32_69 dim 1 : vector<16x16xf32>, i32 -> vector<16x16xf32>
    %c1_i32_70 = arith.constant 1 : i32
    %148 = tpu.dynamic_rotate %140 by %c1_i32_70 dim 1 : vector<16x16xf32>, i32 -> vector<16x16xf32>
    %149 = arith.select %9, %140, %147 : vector<16x16xi1>, vector<16x16xf32>
    %150 = arith.select %7, %140, %148 : vector<16x16xi1>, vector<16x16xf32>
    %151 = arith.subf %149, %150 : vector<16x16xf32>
    %152 = arith.mulf %151, %17 : vector<16x16xf32>
    %153 = arith.addf %146, %152 : vector<16x16xf32>
    %154 = arith.addf %128, %153 : vector<16x16xf32>
    %155 = arith.mulf %101, %101 : vector<16x16xf32>
    %156 = arith.mulf %103, %103 : vector<16x16xf32>
    %157 = arith.addf %155, %156 : vector<16x16xf32>
    %cst_71 = arith.constant 1.000000e+00 : f32
    %158 = vector.broadcast %cst_71 : f32 to vector<16x16xf32>
    %159 = arith.subf %158, %157 : vector<16x16xf32>
    %cst_72 = arith.constant 1.000000e+00 : f32
    %160 = vector.broadcast %cst_72 : f32 to vector<16x16xf32>
    %161 = arith.mulf %160, %159 : vector<16x16xf32>
    %162 = arith.mulf %161, %101 : vector<16x16xf32>
    %163 = arith.addf %154, %162 : vector<16x16xf32>
    %164 = arith.mulf %161, %103 : vector<16x16xf32>
    %165 = arith.mulf %163, %163 : vector<16x16xf32>
    %166 = arith.mulf %164, %164 : vector<16x16xf32>
    %167 = arith.addf %165, %166 : vector<16x16xf32>
    %168 = vector.shape_cast %167 : vector<16x16xf32> to vector<1x16x16xf32>
    %cst_73 = arith.constant dense<0.000000e+00> : vector<1xf32>
    %169 = vector.multi_reduction <add>, %168, %cst_73 [1, 2] : vector<1x16x16xf32> to vector<1xf32>
    %170 = vector.shape_cast %169 : vector<1xf32> to vector<1x1x1xf32>
    %171 = vector.extract %170[0, 0, 0] : f32 from vector<1x1x1xf32>
    %cst_74 = arith.constant 3.906250e-03 : f32
    %172 = arith.mulf %171, %cst_74 : f32
    %173 = arith.addf %95, %172 : f32
    %174 = vector.broadcast %173 : f32 to vector<1x8x128xf32>
    %c0_75 = arith.constant 0 : index
    %c0_76 = arith.constant 0 : index
    %c0_77 = arith.constant 0 : index
    %175 = vector.load %arg3[%c0_75, %c0_76, %c0_77] : memref<1x8x128xf32, #tpu.memory_space<vmem>>, vector<1x8x128xf32>
    tpu.vector_store %arg3[%c0_75, %c0_76, %c0_77], %174 {strides = array<i32>} : memref<1x8x128xf32, #tpu.memory_space<vmem>>, vector<1x8x128xf32>,
    return
  }
  func.func @transform_0(%arg0: i32) -> (i32, i32, i32, i32) {
    %c0_i32 = arith.constant 0 : i32
    %c0_i32_0 = arith.constant 0 : i32
    %c0_i32_1 = arith.constant 0 : i32
    %c0_i32_2 = arith.constant 0 : i32
    return %arg0, %c0_i32, %c0_i32_0, %c0_i32_1 : i32, i32, i32, i32
  }
  func.func @transform_1(%arg0: i32) -> (i32, i32, i32, i32) {
    %c0_i32 = arith.constant 0 : i32
    %c0_i32_0 = arith.constant 0 : i32
    %c0_i32_1 = arith.constant 0 : i32
    %c0_i32_2 = arith.constant 0 : i32
    return %arg0, %c0_i32, %c0_i32_0, %c0_i32_1 : i32, i32, i32, i32
  }
  func.func @transform_2(%arg0: i32) -> (i32, i32, i32) {
    %c0_i32 = arith.constant 0 : i32
    %c0_i32_0 = arith.constant 0 : i32
    %c0_i32_1 = arith.constant 0 : i32
    return %arg0, %c0_i32, %c0_i32_0 : i32, i32, i32
  }
}

</mosaic_0001>

<llo_original>
// kernel: tpu_custom_call.1
$region0: #{tpu_custom_call.1}
  #allocation0 [shape = 'u32[]', space=smem, size = 0x4, offset = 0x4, fixed_abs, tag = 'smem constant byte address 0x4 - core index']
  #allocation1 [shape = 'u32[144,128]{1,0:T(1,128)}', space=vmem, size = 0x12000, scoped, tag = 'internal scratch']
  %s0 = inlined_call_operand.hbm [shape: f32[2,2,16,16], index: 0, kind: input, shape index: {}]
  %s1 = inlined_call_operand.hbm [shape: f32[2,2,16,16], index: 1, kind: input, shape index: {}]
  %s2 = inlined_call_operand.hbm [shape: f32[1,8,128], index: 2, kind: output, shape index: {}]
  %s3 = sld [smem:[#allocation0]]
  $region26: #{tpu_custom_call.1} parent=0
    _
  %s5 = ssub.s32 1, %s3
  %s6 = scalar_select 0, %s5, %s3
  $region1: #{tpu_custom_call.1} parent=0
    #allocation2 [shape = 'u8[32768]{0}', space=vmem, size = 0x8000, scoped, tag = 'input window, operand 0, single buffered']
    #allocation3 [shape = 's32[1]{0}', space=sflag, size = 0x4, scoped, tag = 'scoped memory for tpu_custom_call.1']
    #allocation4 [shape = 's32[1]{0}', space=sflag, size = 0x4, scoped, tag = 'scoped memory for tpu_custom_call.1']
    #allocation5 [shape = 'u8[32768]{0}', space=vmem, size = 0x8000, scoped, tag = 'input window, operand 1, single buffered']
    #allocation6 [shape = 's32[1]{0}', space=sflag, size = 0x4, scoped, tag = 'scoped memory for tpu_custom_call.1']
    #allocation7 [shape = 'u8[4096]{0}', space=vmem, size = 0x1000, scoped, tag = 'output window, operand 0, single buffered']
    %7 = vsyncpa [#allocation3], 0
    %8 = vsyncpa [#allocation6], 0
    %9 = vsyncpa [#allocation4], 0
    // Predicated region
    $region2: #{tpu_custom_call.1} parent=1 // pred_check
      _
    $region3: #{tpu_custom_call.1} parent=1 // pred_check_branch
      %11 = sbr.rel (0) target = $region5
    $region4: #{tpu_custom_call.1} parent=1 // pred_region
      %s13 = ssub.s32 1024, 1024
      %14 = vsyncadd [#allocation3], %s13
      %s15 = sshll.u32 [#allocation2], 4
      %s16 = int_to_ptr.vmem [resolvable:$true] %s15
      %21 = dma.hbm_to_vmem [thread:$0]  %s0, 1024, %s16, [#allocation3], 128, 128, 8
    $region5: #{tpu_custom_call.1} parent=1 // pred_fallthru
      _
    // Predicated region
    $region6: #{tpu_custom_call.1} parent=1 // pred_check
      _
    $region7: #{tpu_custom_call.1} parent=1 // pred_check_branch
      %23 = sbr.rel (0) target = $region9
    $region8: #{tpu_custom_call.1} parent=1 // pred_region
      %s25 = ssub.s32 1024, 1024
      %26 = vsyncadd [#allocation6], %s25
      %s27 = sshll.u32 [#allocation5], 4
      %s28 = int_to_ptr.vmem [resolvable:$true] %s27
      %33 = dma.hbm_to_vmem [thread:$0]  %s1, 1024, %s28, [#allocation6], 128, 128, 8
    $region9: #{tpu_custom_call.1} parent=1 // pred_fallthru
      _
    // Predicated region
    $region10: #{tpu_custom_call.1} parent=1 // pred_check
      _
    $region11: #{tpu_custom_call.1} parent=1 // pred_check_branch
      %35 = sbr.rel (0) target = $region13
    $region12: #{tpu_custom_call.1} parent=1 // pred_region
      %36 = dma.done [#allocation3], 1024
    $region13: #{tpu_custom_call.1} parent=1 // pred_fallthru
      _
    // Predicated region
    $region14: #{tpu_custom_call.1} parent=1 // pred_check
      _
    $region15: #{tpu_custom_call.1} parent=1 // pred_check_branch
      %38 = sbr.rel (0) target = $region17
    $region16: #{tpu_custom_call.1} parent=1 // pred_region
      %39 = dma.done [#allocation6], 1024
    $region17: #{tpu_custom_call.1} parent=1 // pred_fallthru
      _
    %v40 = vlaneseq
    %v41 = vshrl.u32 %v40, 7
    %v42 = vadd.s32 %v41, 8
    %v43 = vlaneseq
    %v44 = vand.u32 %v43, 127
    %vm45 = vcmp.eq.s32.totalorder %v41, 0
    %vm46 = vcmp.eq.s32.totalorder %v42, 0
    %vm47 = vcmp.eq.s32.totalorder %v41, 15
    %vm48 = vcmp.eq.s32.totalorder %v42, 15
    %vm49 = vcmp.eq.s32.totalorder %v44, 0
    %vm50 = vcmp.eq.s32.totalorder %v44, 15
    %vm51 = vmor %vm45, %vm47
    %vm52 = vmor %vm46, %vm48
    %v53 = vsel %vm51, 1.0, 0.5
    %v54 = vsel %vm52, 1.0, 0.5
    %vm55 = vmor %vm49, %vm50
    %v56 = vsel %vm55, 1.0, 0.5
    %v57 = vld [vmem:[#allocation2] sm:$0xff]
    %v58 = vld [vmem:[#allocation2 + $0x8] sm:$0xff]
    %s59 = scalar_lea.vmem [#allocation2], 16
    %v60 = vld [vmem:[%s59] sm:$0xff]
    %v61 = vld [vmem:[%s59 + $0x8] sm:$0xff]
    %v62 = vld [vmem:[#allocation5] sm:$0xff]
    %v63 = vld [vmem:[#allocation5 + $0x8] sm:$0xff]
    %s64 = scalar_lea.vmem [#allocation5], 16
    %v65 = vld [vmem:[%s64] sm:$0xff]
    %v66 = vld [vmem:[%s64 + $0x8] sm:$0xff]
    %v67 = vrot.slane %v57, 1
    %v68 = vrot.slane %v58, 1
    %vm69 = vcmp.lt.s32.totalorder %v41, 7
    %v70 = vsel %vm69, %v67, %v68
    %v71 = vsel %vm69, %v68, %v67
    %v72 = vrot.slane %v57, 7
    %v73 = vrot.slane %v58, 7
    %vm74 = vcmp.lt.s32.totalorder %v41, 1
    %v75 = vsel %vm74, %v72, %v73
    %v76 = vsel %vm74, %v73, %v72
    %v77 = vsel %vm47, %v57, %v70
    %v78 = vsel %vm48, %v58, %v71
    %v79 = vsel %vm45, %v57, %v76
    %v80 = vsel %vm46, %v58, %v75
    %v81 = vsub.f32 %v77, %v79
    %v82 = vsub.f32 %v78, %v80
    %v83 = vmul.f32 %v81, %v53
    %v84 = vmul.f32 %v82, %v54
    %vm85 = vcmask 1047680
    %86 = vrot.lane.b32.xlu0 %v57, 16
    %v87 = vpop.permute.xlu0 %86
    %v88 = vsel %vm85, %v87, %v57
    %89 = vrot.lane.b32.xlu0 %v58, 16
    %v90 = vpop.permute.xlu0 %89
    %v91 = vsel %vm85, %v90, %v58
    %92 = vrot.lane.b32.xlu0 %v88, 16
    %v93 = vpop.permute.xlu0 %92
    %94 = vrot.lane.b32.xlu0 %v91, 16
    %v95 = vpop.permute.xlu0 %94
    %v96 = vsel %vm85, %v93, %v57
    %v97 = vsel %vm85, %v95, %v58
    %100 = vrot.lane.b32.xlu0 %v96, 127
    %v101 = vpop.permute.xlu0 %100
    %102 = vrot.lane.b32.xlu0 %v97, 127
    %v103 = vpop.permute.xlu0 %102
    %v106 = vsel %vm50, %v57, %v101
    %v107 = vsel %vm50, %v58, %v103
    %108 = vrot.lane.b32.xlu0 %v96, 113
    %v109 = vpop.permute.xlu0 %108
    %110 = vrot.lane.b32.xlu0 %v97, 113
    %v111 = vpop.permute.xlu0 %110
    %v114 = vsel %vm49, %v57, %v109
    %v115 = vsel %vm49, %v58, %v111
    %v116 = vsub.f32 %v106, %v114
    %v117 = vsub.f32 %v107, %v115
    %v118 = vmul.f32 %v116, %v56
    %v119 = vmul.f32 %v117, %v56
    %v120 = vrot.slane %v83, 1
    %v121 = vrot.slane %v84, 1
    %v122 = vsel %vm69, %v120, %v121
    %v123 = vsel %vm69, %v121, %v120
    %v124 = vrot.slane %v83, 7
    %v125 = vrot.slane %v84, 7
    %v126 = vsel %vm74, %v124, %v125
    %v127 = vsel %vm74, %v125, %v124
    %v128 = vsel %vm47, %v83, %v122
    %v129 = vsel %vm48, %v84, %v123
    %v130 = vsel %vm45, %v83, %v127
    %v131 = vsel %vm46, %v84, %v126
    %v132 = vsub.f32 %v128, %v130
    %v133 = vsub.f32 %v129, %v131
    %v134 = vmul.f32 %v132, %v53
    %v135 = vmul.f32 %v133, %v54
    %136 = vrot.lane.b32.xlu0 %v118, 16
    %v137 = vpop.permute.xlu0 %136
    %v138 = vsel %vm85, %v137, %v118
    %139 = vrot.lane.b32.xlu0 %v119, 16
    %v140 = vpop.permute.xlu0 %139
    %v141 = vsel %vm85, %v140, %v119
    %142 = vrot.lane.b32.xlu0 %v138, 16
    %v143 = vpop.permute.xlu0 %142
    %144 = vrot.lane.b32.xlu0 %v141, 16
    %v145 = vpop.permute.xlu0 %144
    %v146 = vsel %vm85, %v143, %v118
    %v147 = vsel %vm85, %v145, %v119
    %150 = vrot.lane.b32.xlu0 %v146, 127
    %v151 = vpop.permute.xlu0 %150
    %152 = vrot.lane.b32.xlu0 %v147, 127
    %v153 = vpop.permute.xlu0 %152
    %v156 = vsel %vm50, %v118, %v151
    %v157 = vsel %vm50, %v119, %v153
    %158 = vrot.lane.b32.xlu0 %v146, 113
    %v159 = vpop.permute.xlu0 %158
    %160 = vrot.lane.b32.xlu0 %v147, 113
    %v161 = vpop.permute.xlu0 %160
    %v164 = vsel %vm49, %v118, %v159
    %v165 = vsel %vm49, %v119, %v161
    %v166 = vsub.f32 %v156, %v164
    %v167 = vsub.f32 %v157, %v165
    %v168 = vmul.f32 %v166, %v56
    %v169 = vmul.f32 %v167, %v56
    %v170 = vadd.f32 %v134, %v168
    %v171 = vadd.f32 %v135, %v169
    %v172 = vrot.slane %v60, 1
    %v173 = vrot.slane %v61, 1
    %v174 = vsel %vm69, %v172, %v173
    %v175 = vsel %vm69, %v173, %v172
    %v176 = vrot.slane %v60, 7
    %v177 = vrot.slane %v61, 7
    %v178 = vsel %vm74, %v176, %v177
    %v179 = vsel %vm74, %v177, %v176
    %v180 = vsel %vm47, %v60, %v174
    %v181 = vsel %vm48, %v61, %v175
    %v182 = vsel %vm45, %v60, %v179
    %v183 = vsel %vm46, %v61, %v178
    %v184 = vsub.f32 %v180, %v182
    %v185 = vsub.f32 %v181, %v183
    %v186 = vmul.f32 %v184, %v53
    %v187 = vmul.f32 %v185, %v54
    %188 = vrot.lane.b32.xlu0 %v60, 16
    %v189 = vpop.permute.xlu0 %188
    %v190 = vsel %vm85, %v189, %v60
    %191 = vrot.lane.b32.xlu0 %v61, 16
    %v192 = vpop.permute.xlu0 %191
    %v193 = vsel %vm85, %v192, %v61
    %194 = vrot.lane.b32.xlu0 %v190, 16
    %v195 = vpop.permute.xlu0 %194
    %196 = vrot.lane.b32.xlu0 %v193, 16
    %v197 = vpop.permute.xlu0 %196
    %v198 = vsel %vm85, %v195, %v60
    %v199 = vsel %vm85, %v197, %v61
    %202 = vrot.lane.b32.xlu0 %v198, 127
    %v203 = vpop.permute.xlu0 %202
    %204 = vrot.lane.b32.xlu0 %v199, 127
    %v205 = vpop.permute.xlu0 %204
    %v208 = vsel %vm50, %v60, %v203
    %v209 = vsel %vm50, %v61, %v205
    %210 = vrot.lane.b32.xlu0 %v198, 113
    %v211 = vpop.permute.xlu0 %210
    %212 = vrot.lane.b32.xlu0 %v199, 113
    %v213 = vpop.permute.xlu0 %212
    %v216 = vsel %vm49, %v60, %v211
    %v217 = vsel %vm49, %v61, %v213
    %v218 = vsub.f32 %v208, %v216
    %v219 = vsub.f32 %v209, %v217
    %v220 = vmul.f32 %v218, %v56
    %v221 = vmul.f32 %v219, %v56
    %v222 = vrot.slane %v186, 1
    %v223 = vrot.slane %v187, 1
    %v224 = vsel %vm69, %v222, %v223
    %v225 = vsel %vm69, %v223, %v222
    %v226 = vrot.slane %v186, 7
    %v227 = vrot.slane %v187, 7
    %v228 = vsel %vm74, %v226, %v227
    %v229 = vsel %vm74, %v227, %v226
    %v230 = vsel %vm47, %v186, %v224
    %v231 = vsel %vm48, %v187, %v225
    %v232 = vsel %vm45, %v186, %v229
    %v233 = vsel %vm46, %v187, %v228
    %v234 = vsub.f32 %v230, %v232
    %v235 = vsub.f32 %v231, %v233
    %v236 = vmul.f32 %v234, %v53
    %v237 = vmul.f32 %v235, %v54
    %238 = vrot.lane.b32.xlu0 %v220, 16
    %v239 = vpop.permute.xlu0 %238
    %v240 = vsel %vm85, %v239, %v220
    %241 = vrot.lane.b32.xlu0 %v221, 16
    %v242 = vpop.permute.xlu0 %241
    %v243 = vsel %vm85, %v242, %v221
    %244 = vrot.lane.b32.xlu0 %v240, 16
    %v245 = vpop.permute.xlu0 %244
    %246 = vrot.lane.b32.xlu0 %v243, 16
    %v247 = vpop.permute.xlu0 %246
    %v248 = vsel %vm85, %v245, %v220
    %v249 = vsel %vm85, %v247, %v221
    %252 = vrot.lane.b32.xlu0 %v248, 127
    %v253 = vpop.permute.xlu0 %252
    %254 = vrot.lane.b32.xlu0 %v249, 127
    %v255 = vpop.permute.xlu0 %254
    %v258 = vsel %vm50, %v220, %v253
    %v259 = vsel %vm50, %v221, %v255
    %260 = vrot.lane.b32.xlu0 %v248, 113
    %v261 = vpop.permute.xlu0 %260
    %262 = vrot.lane.b32.xlu0 %v249, 113
    %v263 = vpop.permute.xlu0 %262
    %v266 = vsel %vm49, %v220, %v261
    %v267 = vsel %vm49, %v221, %v263
    %v268 = vsub.f32 %v258, %v266
    %v269 = vsub.f32 %v259, %v267
    %v270 = vmul.f32 %v268, %v56
    %v271 = vmul.f32 %v269, %v56
    %v272 = vadd.f32 %v236, %v270
    %v273 = vadd.f32 %v237, %v271
    %v274 = vadd.f32 %v170, %v272
    %v275 = vadd.f32 %v171, %v273
    %v276 = vmul.f32 %v62, %v62
    %v277 = vmul.f32 %v63, %v63
    %v278 = vmul.f32 %v65, %v65
    %v279 = vmul.f32 %v66, %v66
    %v280 = vadd.f32 %v276, %v278
    %v281 = vadd.f32 %v277, %v279
    %v282 = vsub.f32 1.0, %v280
    %v283 = vsub.f32 1.0, %v281
    %v284 = vmul.f32 %v282, %v62
    %v285 = vmul.f32 %v283, %v63
    %v286 = vadd.f32 %v274, %v284
    %v287 = vadd.f32 %v275, %v285
    %v288 = vmul.f32 %v282, %v65
    %v289 = vmul.f32 %v283, %v66
    %v290 = vmul.f32 %v286, %v286
    %v291 = vmul.f32 %v287, %v287
    %v292 = vmul.f32 %v288, %v288
    %v293 = vmul.f32 %v289, %v289
    %v294 = vadd.f32 %v290, %v292
    %v295 = vadd.f32 %v291, %v293
    %vm296 = vcmask 130048
    %v297 = vsel %vm296, %v294, 0.0
    %v298 = vsel %vm296, %v295, 0.0
    %v299 = vadd.f32 %v297, %v298
    %300 = vadd.xlane.f32.xlu0 %v299
    %v301 = vpop.xlane.xlu0 %300
    %v302 = vrot.slane %v301, 4
    %v303 = vadd.f32 %v301, %v302
    %v304 = vrot.slane %v303, 2
    %v305 = vadd.f32 %v303, %v304
    %v306 = vrot.slane %v305, 1
    %v307 = vadd.f32 %v305, %v306
    %s308 = vtos %v307
    %s309 = smul.f32 %s308, 0.00390625
    %s310 = sadd.f32 %s309, 0.0
    %s311 = scalar_lea.vmem [#allocation2], 32
    %v312 = vld [vmem:[%s311] sm:$0xff]
    %v313 = vld [vmem:[%s311 + $0x8] sm:$0xff]
    %s314 = scalar_lea.vmem [#allocation2], 48
    %v315 = vld [vmem:[%s314] sm:$0xff]
    %v316 = vld [vmem:[%s314 + $0x8] sm:$0xff]
    %s317 = scalar_lea.vmem [#allocation5], 32
    %v318 = vld [vmem:[%s317] sm:$0xff]
    %v319 = vld [vmem:[%s317 + $0x8] sm:$0xff]
    %s320 = scalar_lea.vmem [#allocation5], 48
    %v321 = vld [vmem:[%s320] sm:$0xff]
    %v322 = vld [vmem:[%s320 + $0x8] sm:$0xff]
    %v323 = vrot.slane %v312, 1
    %v324 = vrot.slane %v313, 1
    %v325 = vsel %vm69, %v323, %v324
    %v326 = vsel %vm69, %v324, %v323
    %v327 = vrot.slane %v312, 7
    %v328 = vrot.slane %v313, 7
    %v329 = vsel %vm74, %v327, %v328
    %v330 = vsel %vm74, %v328, %v327
    %v331 = vsel %vm47, %v312, %v325
    %v332 = vsel %vm48, %v313, %v326
    %v333 = vsel %vm45, %v312, %v330
    %v334 = vsel %vm46, %v313, %v329
    %v335 = vsub.f32 %v331, %v333
    %v336 = vsub.f32 %v332, %v334
    %v337 = vmul.f32 %v335, %v53
    %v338 = vmul.f32 %v336, %v54
    %339 = vrot.lane.b32.xlu0 %v312, 16
    %v340 = vpop.permute.xlu0 %339
    %v341 = vsel %vm85, %v340, %v312
    %342 = vrot.lane.b32.xlu0 %v313, 16
    %v343 = vpop.permute.xlu0 %342
    %v344 = vsel %vm85, %v343, %v313
    %345 = vrot.lane.b32.xlu0 %v341, 16
    %v346 = vpop.permute.xlu0 %345
    %347 = vrot.lane.b32.xlu0 %v344, 16
    %v348 = vpop.permute.xlu0 %347
    %v349 = vsel %vm85, %v346, %v312
    %v350 = vsel %vm85, %v348, %v313
    %353 = vrot.lane.b32.xlu0 %v349, 127
    %v354 = vpop.permute.xlu0 %353
    %355 = vrot.lane.b32.xlu0 %v350, 127
    %v356 = vpop.permute.xlu0 %355
    %v359 = vsel %vm50, %v312, %v354
    %v360 = vsel %vm50, %v313, %v356
    %361 = vrot.lane.b32.xlu0 %v349, 113
    %v362 = vpop.permute.xlu0 %361
    %363 = vrot.lane.b32.xlu0 %v350, 113
    %v364 = vpop.permute.xlu0 %363
    %v367 = vsel %vm49, %v312, %v362
    %v368 = vsel %vm49, %v313, %v364
    %v369 = vsub.f32 %v359, %v367
    %v370 = vsub.f32 %v360, %v368
    %v371 = vmul.f32 %v369, %v56
    %v372 = vmul.f32 %v370, %v56
    %v373 = vrot.slane %v337, 1
    %v374 = vrot.slane %v338, 1
    %v375 = vsel %vm69, %v373, %v374
    %v376 = vsel %vm69, %v374, %v373
    %v377 = vrot.slane %v337, 7
    %v378 = vrot.slane %v338, 7
    %v379 = vsel %vm74, %v377, %v378
    %v380 = vsel %vm74, %v378, %v377
    %v381 = vsel %vm47, %v337, %v375
    %v382 = vsel %vm48, %v338, %v376
    %v383 = vsel %vm45, %v337, %v380
    %v384 = vsel %vm46, %v338, %v379
    %v385 = vsub.f32 %v381, %v383
    %v386 = vsub.f32 %v382, %v384
    %v387 = vmul.f32 %v385, %v53
    %v388 = vmul.f32 %v386, %v54
    %389 = vrot.lane.b32.xlu0 %v371, 16
    %v390 = vpop.permute.xlu0 %389
    %v391 = vsel %vm85, %v390, %v371
    %392 = vrot.lane.b32.xlu0 %v372, 16
    %v393 = vpop.permute.xlu0 %392
    %v394 = vsel %vm85, %v393, %v372
    %395 = vrot.lane.b32.xlu0 %v391, 16
    %v396 = vpop.permute.xlu0 %395
    %397 = vrot.lane.b32.xlu0 %v394, 16
    %v398 = vpop.permute.xlu0 %397
    %v399 = vsel %vm85, %v396, %v371
    %v400 = vsel %vm85, %v398, %v372
    %403 = vrot.lane.b32.xlu0 %v399, 127
    %v404 = vpop.permute.xlu0 %403
    %405 = vrot.lane.b32.xlu0 %v400, 127
    %v406 = vpop.permute.xlu0 %405
    %v409 = vsel %vm50, %v371, %v404
    %v410 = vsel %vm50, %v372, %v406
    %411 = vrot.lane.b32.xlu0 %v399, 113
    %v412 = vpop.permute.xlu0 %411
    %413 = vrot.lane.b32.xlu0 %v400, 113
    %v414 = vpop.permute.xlu0 %413
    %v417 = vsel %vm49, %v371, %v412
    %v418 = vsel %vm49, %v372, %v414
    %v419 = vsub.f32 %v409, %v417
    %v420 = vsub.f32 %v410, %v418
    %v421 = vmul.f32 %v419, %v56
    %v422 = vmul.f32 %v420, %v56
    %v423 = vadd.f32 %v387, %v421
    %v424 = vadd.f32 %v388, %v422
    %v425 = vrot.slane %v315, 1
    %v426 = vrot.slane %v316, 1
    %v427 = vsel %vm69, %v425, %v426
    %v428 = vsel %vm69, %v426, %v425
    %v429 = vrot.slane %v315, 7
    %v430 = vrot.slane %v316, 7
    %v431 = vsel %vm74, %v429, %v430
    %v432 = vsel %vm74, %v430, %v429
    %v433 = vsel %vm47, %v315, %v427
    %v434 = vsel %vm48, %v316, %v428
    %v435 = vsel %vm45, %v315, %v432
    %v436 = vsel %vm46, %v316, %v431
    %v437 = vsub.f32 %v433, %v435
    %v438 = vsub.f32 %v434, %v436
    %v439 = vmul.f32 %v437, %v53
    %v440 = vmul.f32 %v438, %v54
    %441 = vrot.lane.b32.xlu0 %v315, 16
    %v442 = vpop.permute.xlu0 %441
    %v443 = vsel %vm85, %v442, %v315
    %444 = vrot.lane.b32.xlu0 %v316, 16
    %v445 = vpop.permute.xlu0 %444
    %v446 = vsel %vm85, %v445, %v316
    %447 = vrot.lane.b32.xlu0 %v443, 16
    %v448 = vpop.permute.xlu0 %447
    %449 = vrot.lane.b32.xlu0 %v446, 16
    %v450 = vpop.permute.xlu0 %449
    %v451 = vsel %vm85, %v448, %v315
    %v452 = vsel %vm85, %v450, %v316
    %455 = vrot.lane.b32.xlu0 %v451, 127
    %v456 = vpop.permute.xlu0 %455
    %457 = vrot.lane.b32.xlu0 %v452, 127
    %v458 = vpop.permute.xlu0 %457
    %v461 = vsel %vm50, %v315, %v456
    %v462 = vsel %vm50, %v316, %v458
    %463 = vrot.lane.b32.xlu0 %v451, 113
    %v464 = vpop.permute.xlu0 %463
    %465 = vrot.lane.b32.xlu0 %v452, 113
    %v466 = vpop.permute.xlu0 %465
    %v469 = vsel %vm49, %v315, %v464
    %v470 = vsel %vm49, %v316, %v466
    %v471 = vsub.f32 %v461, %v469
    %v472 = vsub.f32 %v462, %v470
    %v473 = vmul.f32 %v471, %v56
    %v474 = vmul.f32 %v472, %v56
    %v475 = vrot.slane %v439, 1
    %v476 = vrot.slane %v440, 1
    %v477 = vsel %vm69, %v475, %v476
    %v478 = vsel %vm69, %v476, %v475
    %v479 = vrot.slane %v439, 7
    %v480 = vrot.slane %v440, 7
    %v481 = vsel %vm74, %v479, %v480
    %v482 = vsel %vm74, %v480, %v479
    %v483 = vsel %vm47, %v439, %v477
    %v484 = vsel %vm48, %v440, %v478
    %v485 = vsel %vm45, %v439, %v482
    %v486 = vsel %vm46, %v440, %v481
    %v487 = vsub.f32 %v483, %v485
    %v488 = vsub.f32 %v484, %v486
    %v489 = vmul.f32 %v487, %v53
    %v490 = vmul.f32 %v488, %v54
    %491 = vrot.lane.b32.xlu0 %v473, 16
    %v492 = vpop.permute.xlu0 %491
    %v493 = vsel %vm85, %v492, %v473
    %494 = vrot.lane.b32.xlu0 %v474, 16
    %v495 = vpop.permute.xlu0 %494
    %v496 = vsel %vm85, %v495, %v474
    %497 = vrot.lane.b32.xlu0 %v493, 16
    %v498 = vpop.permute.xlu0 %497
    %499 = vrot.lane.b32.xlu0 %v496, 16
    %v500 = vpop.permute.xlu0 %499
    %v501 = vsel %vm85, %v498, %v473
    %v502 = vsel %vm85, %v500, %v474
    %505 = vrot.lane.b32.xlu0 %v501, 127
    %v506 = vpop.permute.xlu0 %505
    %507 = vrot.lane.b32.xlu0 %v502, 127
    %v508 = vpop.permute.xlu0 %507
    %v511 = vsel %vm50, %v473, %v506
    %v512 = vsel %vm50, %v474, %v508
    %513 = vrot.lane.b32.xlu0 %v501, 113
    %v514 = vpop.permute.xlu0 %513
    %515 = vrot.lane.b32.xlu0 %v502, 113
    %v516 = vpop.permute.xlu0 %515
    %v519 = vsel %vm49, %v473, %v514
    %v520 = vsel %vm49, %v474, %v516
    %v521 = vsub.f32 %v511, %v519
    %v522 = vsub.f32 %v512, %v520
    %v523 = vmul.f32 %v521, %v56
    %v524 = vmul.f32 %v522, %v56
    %v525 = vadd.f32 %v489, %v523
    %v526 = vadd.f32 %v490, %v524
    %v527 = vadd.f32 %v423, %v525
    %v528 = vadd.f32 %v424, %v526
    %v529 = vmul.f32 %v318, %v318
    %v530 = vmul.f32 %v319, %v319
    %v531 = vmul.f32 %v321, %v321
    %v532 = vmul.f32 %v322, %v322
    %v533 = vadd.f32 %v529, %v531
    %v534 = vadd.f32 %v530, %v532
    %v535 = vsub.f32 1.0, %v533
    %v536 = vsub.f32 1.0, %v534
    %v537 = vmul.f32 %v535, %v318
    %v538 = vmul.f32 %v536, %v319
    %v539 = vadd.f32 %v527, %v537
    %v540 = vadd.f32 %v528, %v538
    %v541 = vmul.f32 %v535, %v321
    %v542 = vmul.f32 %v536, %v322
    %v543 = vmul.f32 %v539, %v539
    %v544 = vmul.f32 %v540, %v540
    %v545 = vmul.f32 %v541, %v541
    %v546 = vmul.f32 %v542, %v542
    %v547 = vadd.f32 %v543, %v545
    %v548 = vadd.f32 %v544, %v546
    %v549 = vsel %vm296, %v547, 0.0
    %v550 = vsel %vm296, %v548, 0.0
    %v551 = vadd.f32 %v549, %v550
    %552 = vadd.xlane.f32.xlu0 %v551
    %v553 = vpop.xlane.xlu0 %552
    %v554 = vrot.slane %v553, 4
    %v555 = vadd.f32 %v553, %v554
    %v556 = vrot.slane %v555, 2
    %v557 = vadd.f32 %v555, %v556
    %v558 = vrot.slane %v557, 1
    %v559 = vadd.f32 %v557, %v558
    %s560 = vtos %v559
    %s561 = smul.f32 %s560, 0.00390625
    %s562 = sadd.f32 %s310, %s561
    %v563 = vstv %s562
    %564 = vst [vmem:[#allocation7] sm:$0xff] %v563
    // Predicated region
    $region18: #{tpu_custom_call.1} parent=1 // pred_check
      _
    $region19: #{tpu_custom_call.1} parent=1 // pred_check_branch
      %566 = sbr.rel (0) target = $region21
    $region20: #{tpu_custom_call.1} parent=1 // pred_region
      %s568 = ssub.s32 128, 128
      %569 = vsyncadd [#allocation4], %s568
      %s571 = sshll.u32 [#allocation7], 4
      %s572 = int_to_ptr.vmem [resolvable:$true] %s571
      %574 = dma.vmem_to_hbm [thread:$0]  %s572, 128, %s2, [#allocation4]
    $region21: #{tpu_custom_call.1} parent=1 // pred_fallthru
      _
    // Predicated region
    $region22: #{tpu_custom_call.1} parent=1 // pred_check
      _
    $region23: #{tpu_custom_call.1} parent=1 // pred_check_branch
      %576 = sbr.rel (0) target = $region25
    $region24: #{tpu_custom_call.1} parent=1 // pred_region
      %577 = dma.done [#allocation4], 128
    $region25: #{tpu_custom_call.1} parent=1 // pred_fallthru
      _
    %578 = vsyncpa [#allocation3], 1
    %579 = vsyncpa [#allocation6], 1
    %580 = vsyncpa [#allocation4], 1

</llo_original>
